<compile_context>
chip_gen: v6e
topology: v6e:2x2x1
jax: 0.10.0
libtpu: 0.0.40
codegen_flags: <defaults>
</compile_context>

<pallas_src>
import jax
import jax.numpy as jnp
from jax.experimental import pallas as pl
from jax.experimental.pallas import tpu as pltpu


def _bf16(w):
    return w if w.dtype == jnp.bfloat16 else w.astype(jnp.bfloat16)


def encoder_s2d_kernel(alpha_ref,               # SMEM (3,) PReLU params (f32)
                       x_ref,                   # (TB, D_in)         f32
                       w1_ref, b1_ref,          # (D_in,512) bf16, (1,512) f32
                       w2_ref, b2_ref,          # (512,256)  bf16, (1,256) f32
                       w3_ref, b3_ref,          # (256,128)  bf16, (1,128) f32
                       w4_ref, b4_ref,          # (128,D_out)bf16, (1,D_out) f32
                       o_ref):                  # (TB, D_out)        f32
    # PReLU scalars read once per grid step.
    a1 = alpha_ref[0]
    a2 = alpha_ref[1]
    a3 = alpha_ref[2]

    # bf16 x bf16 -> f32 MXU accumulation for every layer; bias/PReLU in f32.
    x = x_ref[...].astype(jnp.bfloat16)

    h = jnp.dot(x, w1_ref[...], preferred_element_type=jnp.float32) + b1_ref[...]
    h = jnp.where(h > 0, h, a1 * h)

    h = jnp.dot(h.astype(jnp.bfloat16), w2_ref[...],
                preferred_element_type=jnp.float32) + b2_ref[...]
    h = jnp.where(h > 0, h, a2 * h)

    h = jnp.dot(h.astype(jnp.bfloat16), w3_ref[...],
                preferred_element_type=jnp.float32) + b3_ref[...]
    h = jnp.where(h > 0, h, a3 * h)

    h = jnp.dot(h.astype(jnp.bfloat16), w4_ref[...],
                preferred_element_type=jnp.float32) + b4_ref[...]
    o_ref[...] = h.astype(o_ref.dtype)


def encoder_s2d(x, params, *, batch_tile=2048, core_parallel=False,
                vmem_limit_bytes=40 * 1024 * 1024):
    """x: (B, input_size) float32.  params: dict (use prepare_params() once)."""
    B, D_in = x.shape
    D_out = params["w4"].shape[1]

    # Batch tile: whole batch in one block if it fits, else a multiple of 8
    # sublanes.  Block shapes need not divide B: the ragged last block's
    # out-of-bounds rows are dropped by Pallas on writeback.
    if batch_tile >= B:
        TB = B
    else:
        TB = max(8, (batch_tile // 8) * 8)
    grid = (pl.cdiv(B, TB),)

    # bf16 weights feed the MXU (no-op if already prepared); biases stay f32.
    w1, w2, w3, w4 = (_bf16(params["w1"]), _bf16(params["w2"]),
                      _bf16(params["w3"]), _bf16(params["w4"]))

    def const(shape):
        # same block every grid step -> DMA'd once, stays resident in VMEM
        return pl.BlockSpec(shape, lambda i: (0, 0))

    # Advisory cost hint so XLA schedules neighbours around the custom call.
    flops = 2 * B * (D_in * 512 + 512 * 256 + 256 * 128 + 128 * D_out)
    weight_bytes = 2 * (D_in * 512 + 512 * 256 + 256 * 128 + 128 * D_out)
    bias_bytes = 4 * (512 + 256 + 128 + D_out)
    cost = pl.CostEstimate(
        flops=flops,
        transcendentals=0,
        bytes_accessed=4 * B * (D_in + D_out) + weight_bytes + bias_bytes,
    )

    # On v7x, plain "parallel" may not split the grid across the 2 TCs; flip
    # core_parallel=True to force core-level splitting of the batch axis.
    dim_sem = (pltpu.CORE_PARALLEL,) if core_parallel else ("parallel",)

    out = pl.pallas_call(
        encoder_s2d_kernel,
        out_shape=jax.ShapeDtypeStruct((B, D_out), jnp.float32),
        grid=grid,
        in_specs=[
            pl.BlockSpec(memory_space=pltpu.MemorySpace.SMEM),     # alphas
            pl.BlockSpec((TB, D_in), lambda i: (i, 0)),            # x tile
            const((D_in, 512)), const((1, 512)),                   # w1, b1
            const((512, 256)), const((1, 256)),                    # w2, b2
            const((256, 128)), const((1, 128)),                    # w3, b3
            const((128, D_out)), const((1, D_out)),                # w4, b4
        ],
        out_specs=pl.BlockSpec((TB, D_out), lambda i: (i, 0)),
        compiler_params=pltpu.CompilerParams(
            dimension_semantics=dim_sem,
            vmem_limit_bytes=vmem_limit_bytes,
        ),
        cost_estimate=cost,
    )(params["alpha"], x,
      w1, params["b1"],
      w2, params["b2"],
      w3, params["b3"],
      w4, params["b4"])

    return out


def init_params(key, input_size, output_size):
    """Deterministic init mimicking nn.Linear's U(-1/sqrt(fan_in), 1/sqrt(fan_in))."""
    dims = [(input_size, 512), (512, 256), (256, 128), (128, output_size)]
    params = {}
    keys = jax.random.split(key, 2 * len(dims))
    for i, (fan_in, fan_out) in enumerate(dims):
        bound = 1.0 / jnp.sqrt(jnp.float32(fan_in))
        # stored as (in, out) so kernel computes x @ W + b  (== torch x W^T + b)
        w = jax.random.uniform(keys[2 * i], (fan_in, fan_out),
                               minval=-bound, maxval=bound, dtype=jnp.float32)
        b = jax.random.uniform(keys[2 * i + 1], (1, fan_out),
                               minval=-bound, maxval=bound, dtype=jnp.float32)
        params[f"w{i + 1}"] = w
        params[f"b{i + 1}"] = b
    # PReLU default init: 0.25, one scalar parameter per PReLU module (3 of them)
    params["alpha"] = jnp.full((3,), 0.25, dtype=jnp.float32)
    return params


def prepare_params(params):
    """One-time conversion for the kernel: weights -> bf16, biases/alpha f32."""
    p = {}
    for i in range(1, 5):
        p[f"w{i}"] = params[f"w{i}"].astype(jnp.bfloat16)
        p[f"b{i}"] = params[f"b{i}"].astype(jnp.float32)
    p["alpha"] = params["alpha"].astype(jnp.float32)
    return p


def encoder_s2d_ref(x, params):
    """Pure-JAX f32 reference for correctness check."""
    h = x
    for i in range(1, 5):
        h = h @ params[f"w{i}"] + params[f"b{i}"]
        if i < 4:
            a = params["alpha"][i - 1]
            h = jnp.where(h > 0, h, a * h)
    return h


if __name__ == "__main__":
    batch = 48
    input_size = 32
    output_size = 16

    key = jax.random.PRNGKey(0)
    k_param, k_x = jax.random.split(key)

    params = init_params(k_param, input_size, output_size)
    prepared = prepare_params(params)         # bf16 weights, done once
    x = jax.random.normal(k_x, (batch, input_size), dtype=jnp.float32)

    ref = encoder_s2d_ref(x, params)

    # Multi-step pipeline: TB=16 divides B=48 -> grid=(3,).
    out = encoder_s2d(x, prepared, batch_tile=16)
    out = jax.block_until_ready(out)
    assert out.shape == (batch, output_size)
    # bf16 weights / f32 accumulation vs the pure-f32 reference -> loose tol.
    assert jnp.allclose(out, ref, atol=2e-2, rtol=2e-2), "mismatch (even grid)"

    # Ragged last block: TB=32 over B=48 -> grid=(2,), second block partial;
    # exercises the no-explicit-padding path (OOB output rows dropped).
    out2 = encoder_s2d(x, prepared, batch_tile=32)
    out2 = jax.block_until_ready(out2)
    assert out2.shape == (batch, output_size)
    assert jnp.allclose(out2, ref, atol=2e-2, rtol=2e-2), "mismatch (ragged grid)"

    print("KERNEL_OK")
</pallas_src>

<mosaic_0001>
module attributes {stable_mosaic.version = 11 : i64} {
  func.func @encoder_s2d_kernel(%arg0: i32, %arg1: memref<3xf32, #tpu.memory_space<smem>>, %arg2: memref<16x32xf32, #tpu.memory_space<vmem>>, %arg3: memref<32x512xbf16, #tpu.memory_space<vmem>>, %arg4: memref<1x512xf32, #tpu.memory_space<vmem>>, %arg5: memref<512x256xbf16, #tpu.memory_space<vmem>>, %arg6: memref<1x256xf32, #tpu.memory_space<vmem>>, %arg7: memref<256x128xbf16, #tpu.memory_space<vmem>>, %arg8: memref<1x128xf32, #tpu.memory_space<vmem>>, %arg9: memref<128x16xbf16, #tpu.memory_space<vmem>>, %arg10: memref<1x16xf32, #tpu.memory_space<vmem>>, %arg11: memref<16x16xf32, #tpu.memory_space<vmem>>) attributes {dimension_semantics = [#tpu.dimension_semantics<parallel>], iteration_bounds = array<i64: 3>, scalar_prefetch = 0 : i64, scratch_operands = 0 : i64, tpu.core_type = #tpu.core_type<tc>, window_params = [{transform_indices = @transform_0, window_bounds = array<i64: 3>}, {transform_indices = @transform_1, window_bounds = array<i64: 16, 32>}, {pipeline_mode = #tpu.pipeline_mode<synchronous>, transform_indices = @transform_2, window_bounds = array<i64: 32, 512>}, {pipeline_mode = #tpu.pipeline_mode<synchronous>, transform_indices = @transform_3, window_bounds = array<i64: 1, 512>}, {pipeline_mode = #tpu.pipeline_mode<synchronous>, transform_indices = @transform_4, window_bounds = array<i64: 512, 256>}, {pipeline_mode = #tpu.pipeline_mode<synchronous>, transform_indices = @transform_5, window_bounds = array<i64: 1, 256>}, {pipeline_mode = #tpu.pipeline_mode<synchronous>, transform_indices = @transform_6, window_bounds = array<i64: 256, 128>}, {pipeline_mode = #tpu.pipeline_mode<synchronous>, transform_indices = @transform_7, window_bounds = array<i64: 1, 128>}, {pipeline_mode = #tpu.pipeline_mode<synchronous>, transform_indices = @transform_8, window_bounds = array<i64: 128, 16>}, {pipeline_mode = #tpu.pipeline_mode<synchronous>, transform_indices = @transform_9, window_bounds = array<i64: 1, 16>}, {transform_indices = @transform_10, window_bounds = array<i64: 16, 16>}]} {
    %c0 = arith.constant 0 : index
    %0 = memref.load %arg1[%c0] : memref<3xf32, #tpu.memory_space<smem>>
    %c1 = arith.constant 1 : index
    %1 = memref.load %arg1[%c1] : memref<3xf32, #tpu.memory_space<smem>>
    %c2 = arith.constant 2 : index
    %2 = memref.load %arg1[%c2] : memref<3xf32, #tpu.memory_space<smem>>
    %c0_0 = arith.constant 0 : index
    %c0_1 = arith.constant 0 : index
    %3 = vector.load %arg2[%c0_0, %c0_1] : memref<16x32xf32, #tpu.memory_space<vmem>>, vector<16x32xf32>
    %4 = arith.truncf %3 : vector<16x32xf32> to vector<16x32xbf16>
    %c0_2 = arith.constant 0 : index
    %c0_3 = arith.constant 0 : index
    %5 = vector.load %arg3[%c0_2, %c0_3] : memref<32x512xbf16, #tpu.memory_space<vmem>>, vector<32x512xbf16>
    %cst = arith.constant dense<0.000000e+00> : vector<16x512xf32>
    %6 = tpu.matmul %4, %5, %cst {dimension_numbers = #tpu.dot_dimension_numbers<[1], [0], [0], [1], [0, 0, 1, 1], [], []>} : vector<16x32xbf16>, vector<32x512xbf16>, vector<16x512xf32> -> vector<16x512xf32>
    %c0_4 = arith.constant 0 : index
    %c0_5 = arith.constant 0 : index
    %7 = vector.load %arg4[%c0_4, %c0_5] : memref<1x512xf32, #tpu.memory_space<vmem>>, vector<1x512xf32>
    %8 = vector.broadcast %7 : vector<1x512xf32> to vector<16x512xf32>
    %9 = arith.addf %6, %8 : vector<16x512xf32>
    %cst_6 = arith.constant 0.000000e+00 : f32
    %10 = vector.broadcast %cst_6 : f32 to vector<16x512xf32>
    %11 = arith.cmpf ogt, %9, %10 : vector<16x512xf32>
    %12 = vector.broadcast %0 : f32 to vector<16x512xf32>
    %13 = arith.mulf %12, %9 : vector<16x512xf32>
    %14 = arith.select %11, %9, %13 : vector<16x512xi1>, vector<16x512xf32>
    %15 = arith.truncf %14 : vector<16x512xf32> to vector<16x512xbf16>
    %c0_7 = arith.constant 0 : index
    %c0_8 = arith.constant 0 : index
    %16 = vector.load %arg5[%c0_7, %c0_8] : memref<512x256xbf16, #tpu.memory_space<vmem>>, vector<512x256xbf16>
    %cst_9 = arith.constant dense<0.000000e+00> : vector<16x256xf32>
    %17 = tpu.matmul %15, %16, %cst_9 {dimension_numbers = #tpu.dot_dimension_numbers<[1], [0], [0], [1], [0, 0, 1, 1], [], []>} : vector<16x512xbf16>, vector<512x256xbf16>, vector<16x256xf32> -> vector<16x256xf32>
    %c0_10 = arith.constant 0 : index
    %c0_11 = arith.constant 0 : index
    %18 = vector.load %arg6[%c0_10, %c0_11] : memref<1x256xf32, #tpu.memory_space<vmem>>, vector<1x256xf32>
    %19 = vector.broadcast %18 : vector<1x256xf32> to vector<16x256xf32>
    %20 = arith.addf %17, %19 : vector<16x256xf32>
    %cst_12 = arith.constant 0.000000e+00 : f32
    %21 = vector.broadcast %cst_12 : f32 to vector<16x256xf32>
    %22 = arith.cmpf ogt, %20, %21 : vector<16x256xf32>
    %23 = vector.broadcast %1 : f32 to vector<16x256xf32>
    %24 = arith.mulf %23, %20 : vector<16x256xf32>
    %25 = arith.select %22, %20, %24 : vector<16x256xi1>, vector<16x256xf32>
    %26 = arith.truncf %25 : vector<16x256xf32> to vector<16x256xbf16>
    %c0_13 = arith.constant 0 : index
    %c0_14 = arith.constant 0 : index
    %27 = vector.load %arg7[%c0_13, %c0_14] : memref<256x128xbf16, #tpu.memory_space<vmem>>, vector<256x128xbf16>
    %cst_15 = arith.constant dense<0.000000e+00> : vector<16x128xf32>
    %28 = tpu.matmul %26, %27, %cst_15 {dimension_numbers = #tpu.dot_dimension_numbers<[1], [0], [0], [1], [0, 0, 1, 1], [], []>} : vector<16x256xbf16>, vector<256x128xbf16>, vector<16x128xf32> -> vector<16x128xf32>
    %c0_16 = arith.constant 0 : index
    %c0_17 = arith.constant 0 : index
    %29 = vector.load %arg8[%c0_16, %c0_17] : memref<1x128xf32, #tpu.memory_space<vmem>>, vector<1x128xf32>
    %30 = vector.broadcast %29 : vector<1x128xf32> to vector<16x128xf32>
    %31 = arith.addf %28, %30 : vector<16x128xf32>
    %cst_18 = arith.constant 0.000000e+00 : f32
    %32 = vector.broadcast %cst_18 : f32 to vector<16x128xf32>
    %33 = arith.cmpf ogt, %31, %32 : vector<16x128xf32>
    %34 = vector.broadcast %2 : f32 to vector<16x128xf32>
    %35 = arith.mulf %34, %31 : vector<16x128xf32>
    %36 = arith.select %33, %31, %35 : vector<16x128xi1>, vector<16x128xf32>
    %37 = arith.truncf %36 : vector<16x128xf32> to vector<16x128xbf16>
    %c0_19 = arith.constant 0 : index
    %c0_20 = arith.constant 0 : index
    %38 = vector.load %arg9[%c0_19, %c0_20] : memref<128x16xbf16, #tpu.memory_space<vmem>>, vector<128x16xbf16>
    %cst_21 = arith.constant dense<0.000000e+00> : vector<16x16xf32>
    %39 = tpu.matmul %37, %38, %cst_21 {dimension_numbers = #tpu.dot_dimension_numbers<[1], [0], [0], [1], [0, 0, 1, 1], [], []>} : vector<16x128xbf16>, vector<128x16xbf16>, vector<16x16xf32> -> vector<16x16xf32>
    %c0_22 = arith.constant 0 : index
    %c0_23 = arith.constant 0 : index
    %40 = vector.load %arg10[%c0_22, %c0_23] : memref<1x16xf32, #tpu.memory_space<vmem>>, vector<1x16xf32>
    %41 = vector.broadcast %40 : vector<1x16xf32> to vector<16x16xf32>
    %42 = arith.addf %39, %41 : vector<16x16xf32>
    %c0_24 = arith.constant 0 : index
    %c0_25 = arith.constant 0 : index
    %43 = vector.load %arg11[%c0_24, %c0_25] : memref<16x16xf32, #tpu.memory_space<vmem>>, vector<16x16xf32>
    tpu.vector_store %arg11[%c0_24, %c0_25], %42 {strides = array<i32>} : memref<16x16xf32, #tpu.memory_space<vmem>>, vector<16x16xf32>,
    return
  }
  func.func @transform_0(%arg0: i32) -> i32 {
    %c0_i32 = arith.constant 0 : i32
    %c0_i32_0 = arith.constant 0 : i32
    return %c0_i32 : i32
  }
  func.func @transform_1(%arg0: i32) -> (i32, i32) {
    %c0_i32 = arith.constant 0 : i32
    %c0_i32_0 = arith.constant 0 : i32
    return %arg0, %c0_i32 : i32, i32
  }
  func.func @transform_2(%arg0: i32) -> (i32, i32) {
    %c0_i32 = arith.constant 0 : i32
    %c0_i32_0 = arith.constant 0 : i32
    %c0_i32_1 = arith.constant 0 : i32
    return %c0_i32, %c0_i32_0 : i32, i32
  }
  func.func @transform_3(%arg0: i32) -> (i32, i32) {
    %c0_i32 = arith.constant 0 : i32
    %c0_i32_0 = arith.constant 0 : i32
    %c0_i32_1 = arith.constant 0 : i32
    return %c0_i32, %c0_i32_0 : i32, i32
  }
  func.func @transform_4(%arg0: i32) -> (i32, i32) {
    %c0_i32 = arith.constant 0 : i32
    %c0_i32_0 = arith.constant 0 : i32
    %c0_i32_1 = arith.constant 0 : i32
    return %c0_i32, %c0_i32_0 : i32, i32
  }
  func.func @transform_5(%arg0: i32) -> (i32, i32) {
    %c0_i32 = arith.constant 0 : i32
    %c0_i32_0 = arith.constant 0 : i32
    %c0_i32_1 = arith.constant 0 : i32
    return %c0_i32, %c0_i32_0 : i32, i32
  }
  func.func @transform_6(%arg0: i32) -> (i32, i32) {
    %c0_i32 = arith.constant 0 : i32
    %c0_i32_0 = arith.constant 0 : i32
    %c0_i32_1 = arith.constant 0 : i32
    return %c0_i32, %c0_i32_0 : i32, i32
  }
  func.func @transform_7(%arg0: i32) -> (i32, i32) {
    %c0_i32 = arith.constant 0 : i32
    %c0_i32_0 = arith.constant 0 : i32
    %c0_i32_1 = arith.constant 0 : i32
    return %c0_i32, %c0_i32_0 : i32, i32
  }
  func.func @transform_8(%arg0: i32) -> (i32, i32) {
    %c0_i32 = arith.constant 0 : i32
    %c0_i32_0 = arith.constant 0 : i32
    %c0_i32_1 = arith.constant 0 : i32
    return %c0_i32, %c0_i32_0 : i32, i32
  }
  func.func @transform_9(%arg0: i32) -> (i32, i32) {
    %c0_i32 = arith.constant 0 : i32
    %c0_i32_0 = arith.constant 0 : i32
    %c0_i32_1 = arith.constant 0 : i32
    return %c0_i32, %c0_i32_0 : i32, i32
  }
  func.func @transform_10(%arg0: i32) -> (i32, i32) {
    %c0_i32 = arith.constant 0 : i32
    %c0_i32_0 = arith.constant 0 : i32
    return %arg0, %c0_i32 : i32, i32
  }
}

</mosaic_0001>

<llo_original>
// kernel: tpu_custom_call.1
$region0: #{tpu_custom_call.1}
  #allocation0 [shape = 'u32[]', space=smem, size = 0x4, offset = 0x4, fixed_abs, tag = 'smem constant byte address 0x4 - core index']
  #allocation1 [shape = 'u32[144,128]{1,0:T(1,128)}', space=vmem, size = 0x12000, scoped, tag = 'internal scratch']
  %s0 = inlined_call_operand.vmem [shape: f32[3], index: 0, kind: input, shape index: {}]
  %s1 = inlined_call_operand.vmem [shape: f32[48,32], index: 1, kind: input, shape index: {}]
  %s2 = inlined_call_operand.hbm [shape: bf16[32,512], index: 2, kind: input, shape index: {}]
  %s3 = inlined_call_operand.vmem [shape: f32[1,512], index: 3, kind: input, shape index: {}]
  %s4 = inlined_call_operand.hbm [shape: bf16[512,256], index: 4, kind: input, shape index: {}]
  %s5 = inlined_call_operand.vmem [shape: f32[1,256], index: 5, kind: input, shape index: {}]
  %s6 = inlined_call_operand.vmem [shape: bf16[256,128], index: 6, kind: input, shape index: {}]
  %s7 = inlined_call_operand.vmem [shape: f32[1,128], index: 7, kind: input, shape index: {}]
  %s8 = inlined_call_operand.vmem [shape: bf16[128,16], index: 8, kind: input, shape index: {}]
  %s9 = inlined_call_operand.vmem [shape: f32[1,16], index: 9, kind: input, shape index: {}]
  %s10 = inlined_call_operand.vmem [shape: f32[48,16], index: 10, kind: output, shape index: {}]
  %s11 = sld [smem:[#allocation0]]
  $region85: #{tpu_custom_call.1} parent=0
    _
  %s13 = ssub.s32 1, %s11
  %s14 = scalar_select 0, %s13, %s11
  $region1: #{tpu_custom_call.1} parent=0
    #allocation2 [shape = 'u8[512]{0}', space=smem, size = 0x200, scoped, tag = 'input window, operand 0, single buffered']
    #allocation3 [shape = 's32[2]{0}', space=sflag, size = 0x8, scoped, tag = 'scoped memory for tpu_custom_call.1']
    #allocation4 [shape = 's32[2]{0}', space=sflag, size = 0x8, scoped, tag = 'scoped memory for tpu_custom_call.1']
    #allocation5 [shape = 'u8[32768]{0}', space=vmem, size = 0x8000, scoped, tag = 'input window, operand 2, single buffered']
    #allocation6 [shape = 'u8[262144]{0}', space=vmem, size = 0x40000, scoped, tag = 'input window, operand 4, single buffered']
    #allocation7 [shape = 's32[1]{0}', space=sflag, size = 0x4, scoped, tag = 'scoped memory for tpu_custom_call.1']
    %15 = vsyncpa [#allocation4], 0
    %16 = vsyncpa [#allocation3], 0
    %17 = vsyncpa [#allocation7], 0
    loop: start=0, step=1, limit=5
    $region2: #{tpu_custom_call.1} parent=1 // loop_pre_header
      _
    $region3: #{tpu_custom_call.1} parent=1 // loop_header
      %s19 = sphi 0, %s23
      %p20 = scmp.ge.s32.totalorder %s19, 5
      %s27 = sphi 0, %s27
      %s29 = sphi 0, %s27
      %s30 = sphi 0, %s29
      %s44 = sphi 0, %s30
      %s50 = sphi 0, %s52
      %s53 = sphi 0, %s50
      %s54 = sphi 0, %s53
      %s70 = sphi 0, %s54
      %s74 = sphi 0, %s74
      %s76 = sphi 0, %s74
      %s77 = sphi 0, %s76
      %s91 = sphi 0, %s77
      %s95 = sphi 0, %s95
      %s97 = sphi 0, %s95
      %s98 = sphi 0, %s97
      %s112 = sphi 0, %s98
      %s116 = sphi 0, %s116
      %s118 = sphi 0, %s116
      %s119 = sphi 0, %s118
      %s133 = sphi 0, %s119
      %s137 = sphi 0, %s137
      %s139 = sphi 0, %s137
      %s140 = sphi 0, %s139
      %s154 = sphi 0, %s140
      %s158 = sphi 0, %s158
      %s160 = sphi 0, %s158
      %s161 = sphi 0, %s160
      %s175 = sphi 0, %s161
      %s179 = sphi 0, %s179
      %s181 = sphi 0, %s179
      %s182 = sphi 0, %s181
      %s196 = sphi 0, %s182
      %s200 = sphi 0, %s200
      %s202 = sphi 0, %s200
      %s203 = sphi 0, %s202
      %s217 = sphi 0, %s203
      %s221 = sphi 0, %s221
      %s223 = sphi 0, %s221
      %s224 = sphi 0, %s223
      %s238 = sphi 0, %s224
      %s244 = sphi 0, %s246
      %s247 = sphi 0, %s244
      %s248 = sphi 0, %s247
      %s264 = sphi 0, %s248
    $region4: #{tpu_custom_call.1} parent=1 // loop_header_branch
      %22 = sbr.rel (%p20) target = $region8
    $region5: #{tpu_custom_call.1} parent=1 // loop_body
      %s24 = ssub.s32 %s19, 1
      %s25 = ssub.s32 %s19, 2
      %s26 = sadd.s32 %s19, 1
      %s28 = sadd.s32 %s27, 1
      %p31 = scmp.eq.s32.totalorder %s19, 2
      %p32 = scmp.ne.s32.totalorder %s27, %s29
      %p33 = scmp.eq.s32.totalorder %s19, 0
      %p34 = por %p32, %p33
      %p35 = scmp.ne.s32.totalorder %s27, %s29
      %p36 = scmp.eq.s32.totalorder %s24, 2
      %p37 = por %p35, %p36
      %p38 = scmp.ne.s32.totalorder %s29, %s30
      %p39 = scmp.eq.s32.totalorder %s24, 0
      %p40 = por %p38, %p39
      %p41 = scmp.ne.s32.totalorder %s29, %s30
      %p42 = scmp.eq.s32.totalorder %s25, 2
      %p43 = por %p41, %p42
      %p45 = scmp.ne.s32.totalorder %s30, %s44
      %p46 = scmp.eq.s32.totalorder %s25, 0
      %p47 = por %p45, %p46
      %s48 = ssub.s32 %s19, %s26
      %p49 = scmp.eq.s32.totalorder %s48, 0
      %s51 = sadd.s32 %s50, 1
      %s52 = scalar_select %p49, %s50, %s51
      %p55 = pneg %p49
      %p56 = scmp.eq.s32.totalorder %s19, 2
      %p57 = por %p55, %p56
      %p58 = scmp.ne.s32.totalorder %s50, %s53
      %p59 = scmp.eq.s32.totalorder %s19, 0
      %p60 = por %p58, %p59
      %p61 = scmp.ne.s32.totalorder %s50, %s53
      %p62 = scmp.eq.s32.totalorder %s24, 2
      %p63 = por %p61, %p62
      %p64 = scmp.ne.s32.totalorder %s53, %s54
      %p65 = scmp.eq.s32.totalorder %s24, 0
      %p66 = por %p64, %p65
      %p67 = scmp.ne.s32.totalorder %s53, %s54
      %p68 = scmp.eq.s32.totalorder %s25, 2
      %p69 = por %p67, %p68
      %p71 = scmp.ne.s32.totalorder %s54, %s70
      %p72 = scmp.eq.s32.totalorder %s25, 0
      %p73 = por %p71, %p72
      %s75 = sadd.s32 %s74, 1
      %p78 = scmp.eq.s32.totalorder %s19, 2
      %p79 = scmp.ne.s32.totalorder %s74, %s76
      %p80 = scmp.eq.s32.totalorder %s19, 0
      %p81 = por %p79, %p80
      %p82 = scmp.ne.s32.totalorder %s74, %s76
      %p83 = scmp.eq.s32.totalorder %s24, 2
      %p84 = por %p82, %p83
      %p85 = scmp.ne.s32.totalorder %s76, %s77
      %p86 = scmp.eq.s32.totalorder %s24, 0
      %p87 = por %p85, %p86
      %p88 = scmp.ne.s32.totalorder %s76, %s77
      %p89 = scmp.eq.s32.totalorder %s25, 2
      %p90 = por %p88, %p89
      %p92 = scmp.ne.s32.totalorder %s77, %s91
      %p93 = scmp.eq.s32.totalorder %s25, 0
      %p94 = por %p92, %p93
      %s96 = sadd.s32 %s95, 1
      %p99 = scmp.eq.s32.totalorder %s19, 2
      %p100 = scmp.ne.s32.totalorder %s95, %s97
      %p101 = scmp.eq.s32.totalorder %s19, 0
      %p102 = por %p100, %p101
      %p103 = scmp.ne.s32.totalorder %s95, %s97
      %p104 = scmp.eq.s32.totalorder %s24, 2
      %p105 = por %p103, %p104
      %p106 = scmp.ne.s32.totalorder %s97, %s98
      %p107 = scmp.eq.s32.totalorder %s24, 0
      %p108 = por %p106, %p107
      %p109 = scmp.ne.s32.totalorder %s97, %s98
      %p110 = scmp.eq.s32.totalorder %s25, 2
      %p111 = por %p109, %p110
      %p113 = scmp.ne.s32.totalorder %s98, %s112
      %p114 = scmp.eq.s32.totalorder %s25, 0
      %p115 = por %p113, %p114
      %s117 = sadd.s32 %s116, 1
      %p120 = scmp.eq.s32.totalorder %s19, 2
      %p121 = scmp.ne.s32.totalorder %s116, %s118
      %p122 = scmp.eq.s32.totalorder %s19, 0
      %p123 = por %p121, %p122
      %p124 = scmp.ne.s32.totalorder %s116, %s118
      %p125 = scmp.eq.s32.totalorder %s24, 2
      %p126 = por %p124, %p125
      %p127 = scmp.ne.s32.totalorder %s118, %s119
      %p128 = scmp.eq.s32.totalorder %s24, 0
      %p129 = por %p127, %p128
      %p130 = scmp.ne.s32.totalorder %s118, %s119
      %p131 = scmp.eq.s32.totalorder %s25, 2
      %p132 = por %p130, %p131
      %p134 = scmp.ne.s32.totalorder %s119, %s133
      %p135 = scmp.eq.s32.totalorder %s25, 0
      %p136 = por %p134, %p135
      %s138 = sadd.s32 %s137, 1
      %p141 = scmp.eq.s32.totalorder %s19, 2
      %p142 = scmp.ne.s32.totalorder %s137, %s139
      %p143 = scmp.eq.s32.totalorder %s19, 0
      %p144 = por %p142, %p143
      %p145 = scmp.ne.s32.totalorder %s137, %s139
      %p146 = scmp.eq.s32.totalorder %s24, 2
      %p147 = por %p145, %p146
      %p148 = scmp.ne.s32.totalorder %s139, %s140
      %p149 = scmp.eq.s32.totalorder %s24, 0
      %p150 = por %p148, %p149
      %p151 = scmp.ne.s32.totalorder %s139, %s140
      %p152 = scmp.eq.s32.totalorder %s25, 2
      %p153 = por %p151, %p152
      %p155 = scmp.ne.s32.totalorder %s140, %s154
      %p156 = scmp.eq.s32.totalorder %s25, 0
      %p157 = por %p155, %p156
      %s159 = sadd.s32 %s158, 1
      %p162 = scmp.eq.s32.totalorder %s19, 2
      %p163 = scmp.ne.s32.totalorder %s158, %s160
      %p164 = scmp.eq.s32.totalorder %s19, 0
      %p165 = por %p163, %p164
      %p166 = scmp.ne.s32.totalorder %s158, %s160
      %p167 = scmp.eq.s32.totalorder %s24, 2
      %p168 = por %p166, %p167
      %p169 = scmp.ne.s32.totalorder %s160, %s161
      %p170 = scmp.eq.s32.totalorder %s24, 0
      %p171 = por %p169, %p170
      %p172 = scmp.ne.s32.totalorder %s160, %s161
      %p173 = scmp.eq.s32.totalorder %s25, 2
      %p174 = por %p172, %p173
      %p176 = scmp.ne.s32.totalorder %s161, %s175
      %p177 = scmp.eq.s32.totalorder %s25, 0
      %p178 = por %p176, %p177
      %s180 = sadd.s32 %s179, 1
      %p183 = scmp.eq.s32.totalorder %s19, 2
      %p184 = scmp.ne.s32.totalorder %s179, %s181
      %p185 = scmp.eq.s32.totalorder %s19, 0
      %p186 = por %p184, %p185
      %p187 = scmp.ne.s32.totalorder %s179, %s181
      %p188 = scmp.eq.s32.totalorder %s24, 2
      %p189 = por %p187, %p188
      %p190 = scmp.ne.s32.totalorder %s181, %s182
      %p191 = scmp.eq.s32.totalorder %s24, 0
      %p192 = por %p190, %p191
      %p193 = scmp.ne.s32.totalorder %s181, %s182
      %p194 = scmp.eq.s32.totalorder %s25, 2
      %p195 = por %p193, %p194
      %p197 = scmp.ne.s32.totalorder %s182, %s196
      %p198 = scmp.eq.s32.totalorder %s25, 0
      %p199 = por %p197, %p198
      %s201 = sadd.s32 %s200, 1
      %p204 = scmp.eq.s32.totalorder %s19, 2
      %p205 = scmp.ne.s32.totalorder %s200, %s202
      %p206 = scmp.eq.s32.totalorder %s19, 0
      %p207 = por %p205, %p206
      %p208 = scmp.ne.s32.totalorder %s200, %s202
      %p209 = scmp.eq.s32.totalorder %s24, 2
      %p210 = por %p208, %p209
      %p211 = scmp.ne.s32.totalorder %s202, %s203
      %p212 = scmp.eq.s32.totalorder %s24, 0
      %p213 = por %p211, %p212
      %p214 = scmp.ne.s32.totalorder %s202, %s203
      %p215 = scmp.eq.s32.totalorder %s25, 2
      %p216 = por %p214, %p215
      %p218 = scmp.ne.s32.totalorder %s203, %s217
      %p219 = scmp.eq.s32.totalorder %s25, 0
      %p220 = por %p218, %p219
      %s222 = sadd.s32 %s221, 1
      %p225 = scmp.eq.s32.totalorder %s19, 2
      %p226 = scmp.ne.s32.totalorder %s221, %s223
      %p227 = scmp.eq.s32.totalorder %s19, 0
      %p228 = por %p226, %p227
      %p229 = scmp.ne.s32.totalorder %s221, %s223
      %p230 = scmp.eq.s32.totalorder %s24, 2
      %p231 = por %p229, %p230
      %p232 = scmp.ne.s32.totalorder %s223, %s224
      %p233 = scmp.eq.s32.totalorder %s24, 0
      %p234 = por %p232, %p233
      %p235 = scmp.ne.s32.totalorder %s223, %s224
      %p236 = scmp.eq.s32.totalorder %s25, 2
      %p237 = por %p235, %p236
      %p239 = scmp.ne.s32.totalorder %s224, %s238
      %p240 = scmp.eq.s32.totalorder %s25, 0
      %p241 = por %p239, %p240
      %s242 = ssub.s32 %s19, %s26
      %p243 = scmp.eq.s32.totalorder %s242, 0
      %s245 = sadd.s32 %s244, 1
      %s246 = scalar_select %p243, %s244, %s245
      %p249 = pneg %p243
      %p250 = scmp.eq.s32.totalorder %s19, 2
      %p251 = por %p249, %p250
      %p252 = scmp.ne.s32.totalorder %s244, %s247
      %p253 = scmp.eq.s32.totalorder %s19, 0
      %p254 = por %p252, %p253
      %p255 = scmp.ne.s32.totalorder %s244, %s247
      %p256 = scmp.eq.s32.totalorder %s24, 2
      %p257 = por %p255, %p256
      %p258 = scmp.ne.s32.totalorder %s247, %s248
      %p259 = scmp.eq.s32.totalorder %s24, 0
      %p260 = por %p258, %p259
      %p261 = scmp.ne.s32.totalorder %s247, %s248
      %p262 = scmp.eq.s32.totalorder %s25, 2
      %p263 = por %p261, %p262
      %p265 = scmp.ne.s32.totalorder %s248, %s264
      %p266 = scmp.eq.s32.totalorder %s25, 0
      %p267 = por %p265, %p266
      %p268 = scmp.le.s32.totalorder 1, %s19
      %p269 = scmp.lt.s32.totalorder %s19, 4
      %p270 = pnand %p268, %p269
      %p271 = pneg %p270
      // Predicated region
      $region9: #{tpu_custom_call.1} parent=5 // pred_check
        _
      $region10: #{tpu_custom_call.1} parent=5 // pred_check_branch
        %273 = sbr.rel (%p270) target = $region12
      $region11: #{tpu_custom_call.1} parent=5 // pred_region
        %s274 = ssub.s32 %s19, 1
        // Predicated region
        $region13: #{tpu_custom_call.1} parent=11 // pred_check
          %p275 = pneg %p40
        $region14: #{tpu_custom_call.1} parent=11 // pred_check_branch
          %277 = sbr.rel (%p275) target = $region16
        $region15: #{tpu_custom_call.1} parent=11 // pred_region
          %s279 = ssub.s32 16, 16
          %280 = vsyncadd [#allocation4], %s279
          %s282 = sshll.u32 %s0, 4
          %s283 = int_to_ptr.vmem [resolvable:$true] %s282
          %285 = dma.vmem_to_smem %s283, 16, [#allocation2], [#allocation4]
        $region16: #{tpu_custom_call.1} parent=11 // pred_fallthru
          _
        // Predicated region
        $region17: #{tpu_custom_call.1} parent=11 // pred_check
          %p286 = pneg %p87
        $region18: #{tpu_custom_call.1} parent=11 // pred_check_branch
          %288 = sbr.rel (%p286) target = $region20
        $region19: #{tpu_custom_call.1} parent=11 // pred_region
          %s290 = ssub.s32 1024, 1024
          %291 = vsyncadd [#allocation3], %s290
          %s292 = sshll.u32 [#allocation5], 4
          %s293 = int_to_ptr.vmem [resolvable:$true] %s292
          %298 = dma.hbm_to_vmem [thread:$0]  %s2, 1024, %s293, [#allocation3], 256, 256, 16
        $region20: #{tpu_custom_call.1} parent=11 // pred_fallthru
          _
        // Predicated region
        $region21: #{tpu_custom_call.1} parent=11 // pred_check
          %p299 = pneg %p108
        $region22: #{tpu_custom_call.1} parent=11 // pred_check_branch
          %301 = sbr.rel (%p299) target = $region24
        $region23: #{tpu_custom_call.1} parent=11 // pred_region
          _
        $region24: #{tpu_custom_call.1} parent=11 // pred_fallthru
          _
        // Predicated region
        $region25: #{tpu_custom_call.1} parent=11 // pred_check
          %p302 = pneg %p129
        $region26: #{tpu_custom_call.1} parent=11 // pred_check_branch
          %304 = sbr.rel (%p302) target = $region28
        $region27: #{tpu_custom_call.1} parent=11 // pred_region
          %s306 = ssub.s32 8192, 8192
          %307 = vsyncadd [#allocation7], %s306
          %s308 = sshll.u32 [#allocation6], 4
          %s309 = int_to_ptr.vmem [resolvable:$true] %s308
          %314 = dma.hbm_to_vmem [thread:$0]  %s4, 8192, %s309, [#allocation7], 128, 128, 8
        $region28: #{tpu_custom_call.1} parent=11 // pred_fallthru
          _
        // Predicated region
        $region29: #{tpu_custom_call.1} parent=11 // pred_check
          %p315 = pneg %p150
        $region30: #{tpu_custom_call.1} parent=11 // pred_check_branch
          %317 = sbr.rel (%p315) target = $region32
        $region31: #{tpu_custom_call.1} parent=11 // pred_region
          _
        $region32: #{tpu_custom_call.1} parent=11 // pred_fallthru
          _
        // Predicated region
        $region33: #{tpu_custom_call.1} parent=11 // pred_check
          %p318 = pneg %p171
        $region34: #{tpu_custom_call.1} parent=11 // pred_check_branch
          %320 = sbr.rel (%p318) target = $region36
        $region35: #{tpu_custom_call.1} parent=11 // pred_region
          _
        $region36: #{tpu_custom_call.1} parent=11 // pred_fallthru
          _
        // Predicated region
        $region37: #{tpu_custom_call.1} parent=11 // pred_check
          %p321 = pneg %p192
        $region38: #{tpu_custom_call.1} parent=11 // pred_check_branch
          %323 = sbr.rel (%p321) target = $region40
        $region39: #{tpu_custom_call.1} parent=11 // pred_region
          _
        $region40: #{tpu_custom_call.1} parent=11 // pred_fallthru
          _
        // Predicated region
        $region41: #{tpu_custom_call.1} parent=11 // pred_check
          %p324 = pneg %p213
        $region42: #{tpu_custom_call.1} parent=11 // pred_check_branch
          %326 = sbr.rel (%p324) target = $region44
        $region43: #{tpu_custom_call.1} parent=11 // pred_region
          _
        $region44: #{tpu_custom_call.1} parent=11 // pred_fallthru
          _
        // Predicated region
        $region45: #{tpu_custom_call.1} parent=11 // pred_check
          %p327 = pneg %p234
        $region46: #{tpu_custom_call.1} parent=11 // pred_check_branch
          %329 = sbr.rel (%p327) target = $region48
        $region47: #{tpu_custom_call.1} parent=11 // pred_region
          _
        $region48: #{tpu_custom_call.1} parent=11 // pred_fallthru
          _
      $region12: #{tpu_custom_call.1} parent=5 // pred_fallthru
        _
      %p330 = scmp.lt.s32.totalorder %s19, 3
      // Predicated region
      $region49: #{tpu_custom_call.1} parent=5 // pred_check
        %p331 = pneg %p330
      $region50: #{tpu_custom_call.1} parent=5 // pred_check_branch
        %333 = sbr.rel (%p331) target = $region52
      $region51: #{tpu_custom_call.1} parent=5 // pred_region
        // Predicated region
        $region53: #{tpu_custom_call.1} parent=51 // pred_check
          %p334 = pneg %p60
        $region54: #{tpu_custom_call.1} parent=51 // pred_check_branch
          %336 = sbr.rel (%p334) target = $region56
        $region55: #{tpu_custom_call.1} parent=51 // pred_region
          %s337 = smul.u32 2, %s19
          %p338 = scmp.lt.s32.totalorder %s337, 5
          %s339 = scalar_select %p338, %s337, 5
          %s340 = smul.addr %s339, 8
          %s341 = scalar_lea.vmem %s1, %s340
          %s342 = smul.u32 2, %s19
        $region56: #{tpu_custom_call.1} parent=51 // pred_fallthru
          _
      $region52: #{tpu_custom_call.1} parent=5 // pred_fallthru
        _
      %p343 = scmp.le.s32.totalorder 1, %s19
      %p344 = scmp.lt.s32.totalorder %s19, 4
      %p345 = pnand %p343, %p344
      %p346 = pneg %p345
      // Predicated region
      $region57: #{tpu_custom_call.1} parent=5 // pred_check
        _
      $region58: #{tpu_custom_call.1} parent=5 // pred_check_branch
        %348 = sbr.rel (%p345) target = $region60
      $region59: #{tpu_custom_call.1} parent=5 // pred_region
        %s349 = ssub.s32 %s19, 1
        // Predicated region
        $region61: #{tpu_custom_call.1} parent=59 // pred_check
          %p350 = pneg %p40
        $region62: #{tpu_custom_call.1} parent=59 // pred_check_branch
          %352 = sbr.rel (%p350) target = $region64
        $region63: #{tpu_custom_call.1} parent=59 // pred_region
          %353 = dma.done [#allocation4], 16
        $region64: #{tpu_custom_call.1} parent=59 // pred_fallthru
          _
        // Predicated region
        $region65: #{tpu_custom_call.1} parent=59 // pred_check
          %p354 = pneg %p87
        $region66: #{tpu_custom_call.1} parent=59 // pred_check_branch
          %356 = sbr.rel (%p354) target = $region68
        $region67: #{tpu_custom_call.1} parent=59 // pred_region
          %357 = dma.done [#allocation3], 1024
        $region68: #{tpu_custom_call.1} parent=59 // pred_fallthru
          _
        // Predicated region
        $region69: #{tpu_custom_call.1} parent=59 // pred_check
          %p358 = pneg %p129
        $region70: #{tpu_custom_call.1} parent=59 // pred_check_branch
          %360 = sbr.rel (%p358) target = $region72
        $region71: #{tpu_custom_call.1} parent=59 // pred_region
          %361 = dma.done [#allocation7], 8192
        $region72: #{tpu_custom_call.1} parent=59 // pred_fallthru
          _
        %362 = sfence
        %p363 = pneg %p40
        %p364 = pneg %p37
        %s365 = smul.u32 2, %s24
        %p366 = scmp.lt.s32.totalorder %s365, 5
        %s367 = scalar_select %p366, %s365, 5
        %s368 = smul.addr %s367, 8
        %s369 = scalar_lea.vmem %s1, %s368
        %p370 = pneg %p66
        %p371 = pneg %p63
        %p372 = pneg %p87
        %p373 = pneg %p84
        %p374 = pneg %p108
        %p375 = pneg %p105
        %p376 = pneg %p129
        %p377 = pneg %p126
        %p378 = pneg %p150
        %p379 = pneg %p147
        %p380 = pneg %p171
        %p381 = pneg %p168
        %p382 = pneg %p192
        %p383 = pneg %p189
        %p384 = pneg %p213
        %p385 = pneg %p210
        %p386 = pneg %p234
        %p387 = pneg %p231
        %p388 = pneg %p260
        %p389 = pneg %p257
        %s390 = smul.u32 2, %s24
        %p391 = scmp.lt.s32.totalorder %s390, 5
        %s392 = scalar_select %p391, %s390, 5
        %s393 = smul.addr %s392, 8
        %s394 = scalar_lea.vmem %s10, %s393
        %s395 = smul.u32 2, %s24
        %p396 = scmp.lt.s32.totalorder %s395, 5
        %s397 = scalar_select %p396, %s395, 5
        %s398 = smul.addr %s397, 8
        %s399 = scalar_lea.vmem %s1, %s398
        %s400 = smul.u32 2, %s24
        %s401 = smul.u32 2, %s24
        %p402 = scmp.lt.s32.totalorder %s401, 5
        %s403 = scalar_select %p402, %s401, 5
        %s404 = smul.addr %s403, 8
        %s405 = scalar_lea.vmem %s10, %s404
        %s406 = smul.u32 2, %s24
        %s408 = sld [smem:[#allocation2]]
        %s409 = sld [smem:[#allocation2 + $0x1]]
        %s410 = sld [smem:[#allocation2 + $0x2]]
        %v411 = vld [vmem:[%s399] sm:$0xff]
        %v412 = vld [vmem:[%s399 + $0x8] sm:$0xff]
        %v413 = vpack.c.bf16 %v412, %v411
        %v414 = vld [vmem:[#allocation5] sm:$0xff]
        %v415 = vld [vmem:[#allocation5 + $0x8] sm:$0xff]
        %v416 = vld [vmem:[#allocation5 + $0x10] sm:$0xff]
        %v417 = vld [vmem:[#allocation5 + $0x18] sm:$0xff]
        %v418 = vld [vmem:[#allocation5 + $0x20] sm:$0xff]
        %v419 = vld [vmem:[#allocation5 + $0x28] sm:$0xff]
        %v420 = vld [vmem:[#allocation5 + $0x30] sm:$0xff]
        %v421 = vld [vmem:[#allocation5 + $0x38] sm:$0xff]
        %v422 = vld [vmem:[%s3] sm:$0xf]
        %v424 = vlaneseq
        %v425 = vshrl.u32 %v424, 7
        %v426 = vsub.s32 0, %v425
        %v427 = vrot.slane %v422, %v426
        %v428 = vlaneseq
        %v429 = vshrl.u32 %v428, 7
        %v430 = vsub.s32 1, %v429
        %v431 = vrot.slane %v422, %v430
        %v432 = vlaneseq
        %v433 = vshrl.u32 %v432, 7
        %v434 = vsub.s32 2, %v433
        %v435 = vrot.slane %v422, %v434
        %v436 = vlaneseq
        %v437 = vshrl.u32 %v436, 7
        %v438 = vsub.s32 3, %v437
        %v439 = vrot.slane %v422, %v438
        %v452 = vunpack.c.l.b16 %v414
        %v453 = vunpack.c.h.b16 %v414
        %v454 = vunpack.c.l.b16 %v415
        %v455 = vunpack.c.h.b16 %v415
        %v456 = vunpack.c.l.b16 %v416
        %v457 = vunpack.c.h.b16 %v416
        %v458 = vunpack.c.l.b16 %v417
        %v459 = vunpack.c.h.b16 %v417
        %v460 = vunpack.c.l.b16 %v418
        %v461 = vunpack.c.h.b16 %v418
        %v462 = vunpack.c.l.b16 %v419
        %v463 = vunpack.c.h.b16 %v419
        %v464 = vunpack.c.l.b16 %v420
        %v465 = vunpack.c.h.b16 %v420
        %v466 = vunpack.c.l.b16 %v421
        %v467 = vunpack.c.h.b16 %v421
        %v468 = vpack.c.b16 %v456, %v452
        %v469 = vpack.c.b16 %v457, %v453
        %v470 = vpack.c.b16 %v458, %v454
        %v471 = vpack.c.b16 %v459, %v455
        %v472 = vpack.c.b16 %v464, %v460
        %v473 = vpack.c.b16 %v465, %v461
        %v474 = vpack.c.b16 %v466, %v462
        %v475 = vpack.c.b16 %v467, %v463
        %vm484 = vcmask 261120
        %v486 = vsel %vm484, %v413, 0
        %488 = vmatprep.subr.bf16.mxu0 0
        %489 = vmatpush1.bf16.msra.mxu0 0
        %490 = vmatprep.subr.bf16.mxu0 0
        %491 = vmatpush1.bf16.msra.mxu0 0
        %492 = vmatprep.subr.bf16.mxu0 0
        %493 = vmatpush1.bf16.msra.mxu0 0
        %494 = vmatprep.subr.bf16.mxu0 0
        %495 = vmatpush1.bf16.msra.mxu0 0
        %496 = vmatprep.subr.bf16.mxu0 0
        %497 = vmatpush1.bf16.msra.mxu0 0
        %498 = vmatprep.subr.bf16.mxu0 0
        %499 = vmatpush1.bf16.msra.mxu0 0
        %500 = vmatprep.subr.bf16.mxu0 %v473
        %501 = vmatpush1.bf16.msra.mxu0 %v472
        %502 = vmatprep.subr.bf16.mxu0 %v469
        %503 = vmatpush1.bf16.msra.mxu0 %v468
        %504 = vmatprep.subr.bf16.mxu0 0
        %505 = vmatpush2.bf16.msra.mxu0 0
        %506 = vmatprep.subr.bf16.mxu0 0
        %507 = vmatpush2.bf16.msra.mxu0 0
        %508 = vmatprep.subr.bf16.mxu0 0
        %509 = vmatpush2.bf16.msra.mxu0 0
        %510 = vmatprep.subr.bf16.mxu0 0
        %511 = vmatpush2.bf16.msra.mxu0 0
        %512 = vmatprep.subr.bf16.mxu0 0
        %513 = vmatpush2.bf16.msra.mxu0 0
        %514 = vmatprep.subr.bf16.mxu0 0
        %515 = vmatpush2.bf16.msra.mxu0 0
        %516 = vmatprep.subr.bf16.mxu0 0
        %517 = vmatpush2.bf16.msra.mxu0 0
        %518 = vmatprep.subr.bf16.mxu0 0
        %519 = vmatpush2.bf16.msra.mxu0 0
        %520 = vmatprep.mubr.bf16.mxu0 0
        %521 = vmatmul.mubr.bf16.gmra.mxu0 %v486
        %v522 = vpop.f32.mrf.mxu0
        %v523 = vadd.f32 %v427, %v522
        %v524 = vpop.f32.mrf.mxu0
        %v525 = vadd.f32 %v431, %v524
        %v526 = vpop.f32.mrf.mxu0
        %v527 = vadd.f32 %v427, %v526
        %v528 = vpop.f32.mrf.mxu0
        %v529 = vadd.f32 %v431, %v528
        %530 = vdwg.mxu0
        %531 = vmatprep.subr.bf16.mxu0 0
        %532 = vmatpush1.bf16.msra.mxu0 0
        %533 = vmatprep.subr.bf16.mxu0 0
        %534 = vmatpush1.bf16.msra.mxu0 0
        %535 = vmatprep.subr.bf16.mxu0 0
        %536 = vmatpush1.bf16.msra.mxu0 0
        %537 = vmatprep.subr.bf16.mxu0 0
        %538 = vmatpush1.bf16.msra.mxu0 0
        %539 = vmatprep.subr.bf16.mxu0 0
        %540 = vmatpush1.bf16.msra.mxu0 0
        %541 = vmatprep.subr.bf16.mxu0 0
        %542 = vmatpush1.bf16.msra.mxu0 0
        %543 = vmatprep.subr.bf16.mxu0 %v475
        %544 = vmatpush1.bf16.msra.mxu0 %v474
        %545 = vmatprep.subr.bf16.mxu0 %v471
        %546 = vmatpush1.bf16.msra.mxu0 %v470
        %547 = vmatprep.subr.bf16.mxu0 0
        %548 = vmatpush2.bf16.msra.mxu0 0
        %549 = vmatprep.subr.bf16.mxu0 0
        %550 = vmatpush2.bf16.msra.mxu0 0
        %551 = vmatprep.subr.bf16.mxu0 0
        %552 = vmatpush2.bf16.msra.mxu0 0
        %553 = vmatprep.subr.bf16.mxu0 0
        %554 = vmatpush2.bf16.msra.mxu0 0
        %555 = vmatprep.subr.bf16.mxu0 0
        %556 = vmatpush2.bf16.msra.mxu0 0
        %557 = vmatprep.subr.bf16.mxu0 0
        %558 = vmatpush2.bf16.msra.mxu0 0
        %559 = vmatprep.subr.bf16.mxu0 0
        %560 = vmatpush2.bf16.msra.mxu0 0
        %561 = vmatprep.subr.bf16.mxu0 0
        %562 = vmatpush2.bf16.msra.mxu0 0
        %563 = vmatprep.mubr.bf16.mxu0 0
        %564 = vmatmul.mubr.bf16.gmra.mxu0 %v486
        %v565 = vpop.f32.mrf.mxu0
        %v566 = vadd.f32 %v435, %v565
        %v567 = vpop.f32.mrf.mxu0
        %v568 = vadd.f32 %v439, %v567
        %v569 = vpop.f32.mrf.mxu0
        %v570 = vadd.f32 %v435, %v569
        %v571 = vpop.f32.mrf.mxu0
        %v572 = vadd.f32 %v439, %v571
        %573 = vdwg.mxu0
        %vm574 = vcmp.gt.f32.partialorder %v523, 0.0
        %vm575 = vcmp.gt.f32.partialorder %v525, 0.0
        %vm576 = vcmp.gt.f32.partialorder %v566, 0.0
        %vm577 = vcmp.gt.f32.partialorder %v568, 0.0
        %vm578 = vcmp.gt.f32.partialorder %v527, 0.0
        %vm579 = vcmp.gt.f32.partialorder %v529, 0.0
        %vm580 = vcmp.gt.f32.partialorder %v570, 0.0
        %vm581 = vcmp.gt.f32.partialorder %v572, 0.0
        %v582 = vstv %s408
        %v583 = vmul.f32 %v582, %v523
        %v584 = vmul.f32 %v582, %v525
        %v585 = vmul.f32 %v582, %v566
        %v586 = vmul.f32 %v582, %v568
        %v587 = vmul.f32 %v582, %v527
        %v588 = vmul.f32 %v582, %v529
        %v589 = vmul.f32 %v582, %v570
        %v590 = vmul.f32 %v582, %v572
        %v591 = vsel %vm574, %v523, %v583
        %v592 = vsel %vm575, %v525, %v584
        %v593 = vsel %vm576, %v566, %v585
        %v594 = vsel %vm577, %v568, %v586
        %v595 = vsel %vm578, %v527, %v587
        %v596 = vsel %vm579, %v529, %v588
        %v597 = vsel %vm580, %v570, %v589
        %v598 = vsel %vm581, %v572, %v590
        %v599 = vpack.c.bf16 %v595, %v591
        %v600 = vpack.c.bf16 %v596, %v592
        %v601 = vpack.c.bf16 %v597, %v593
        %v602 = vpack.c.bf16 %v598, %v594
        %v603 = vld [vmem:[#allocation6] sm:$0xff]
        %v604 = vld [vmem:[#allocation6 + $0x8] sm:$0xff]
        %v605 = vld [vmem:[#allocation6 + $0x10] sm:$0xff]
        %v606 = vld [vmem:[#allocation6 + $0x18] sm:$0xff]
        %v607 = vld [vmem:[#allocation6 + $0x20] sm:$0xff]
        %v608 = vld [vmem:[#allocation6 + $0x28] sm:$0xff]
        %v609 = vld [vmem:[#allocation6 + $0x30] sm:$0xff]
        %v610 = vld [vmem:[#allocation6 + $0x38] sm:$0xff]
        %v611 = vld [vmem:[#allocation6 + $0x40] sm:$0xff]
        %v612 = vld [vmem:[#allocation6 + $0x48] sm:$0xff]
        %v613 = vld [vmem:[#allocation6 + $0x50] sm:$0xff]
        %v614 = vld [vmem:[#allocation6 + $0x58] sm:$0xff]
        %v615 = vld [vmem:[#allocation6 + $0x60] sm:$0xff]
        %v616 = vld [vmem:[#allocation6 + $0x68] sm:$0xff]
        %v617 = vld [vmem:[#allocation6 + $0x70] sm:$0xff]
        %v618 = vld [vmem:[#allocation6 + $0x78] sm:$0xff]
        %v619 = vld [vmem:[#allocation6 + $0x80] sm:$0xff]
        %v620 = vld [vmem:[#allocation6 + $0x88] sm:$0xff]
        %v621 = vld [vmem:[#allocation6 + $0x90] sm:$0xff]
        %v622 = vld [vmem:[#allocation6 + $0x98] sm:$0xff]
        %v623 = vld [vmem:[#allocation6 + $0xa0] sm:$0xff]
        %v624 = vld [vmem:[#allocation6 + $0xa8] sm:$0xff]
        %v625 = vld [vmem:[#allocation6 + $0xb0] sm:$0xff]
        %v626 = vld [vmem:[#allocation6 + $0xb8] sm:$0xff]
        %v627 = vld [vmem:[#allocation6 + $0xc0] sm:$0xff]
        %v628 = vld [vmem:[#allocation6 + $0xc8] sm:$0xff]
        %v629 = vld [vmem:[#allocation6 + $0xd0] sm:$0xff]
        %v630 = vld [vmem:[#allocation6 + $0xd8] sm:$0xff]
        %v631 = vld [vmem:[#allocation6 + $0xe0] sm:$0xff]
        %v632 = vld [vmem:[#allocation6 + $0xe8] sm:$0xff]
        %v633 = vld [vmem:[#allocation6 + $0xf0] sm:$0xff]
        %v634 = vld [vmem:[#allocation6 + $0xf8] sm:$0xff]
        %v635 = vld [vmem:[#allocation6 + $0x100] sm:$0xff]
        %v636 = vld [vmem:[#allocation6 + $0x108] sm:$0xff]
        %v637 = vld [vmem:[#allocation6 + $0x110] sm:$0xff]
        %v638 = vld [vmem:[#allocation6 + $0x118] sm:$0xff]
        %v639 = vld [vmem:[#allocation6 + $0x120] sm:$0xff]
        %v640 = vld [vmem:[#allocation6 + $0x128] sm:$0xff]
        %v641 = vld [vmem:[#allocation6 + $0x130] sm:$0xff]
        %v642 = vld [vmem:[#allocation6 + $0x138] sm:$0xff]
        %v643 = vld [vmem:[#allocation6 + $0x140] sm:$0xff]
        %v644 = vld [vmem:[#allocation6 + $0x148] sm:$0xff]
        %v645 = vld [vmem:[#allocation6 + $0x150] sm:$0xff]
        %v646 = vld [vmem:[#allocation6 + $0x158] sm:$0xff]
        %v647 = vld [vmem:[#allocation6 + $0x160] sm:$0xff]
        %v648 = vld [vmem:[#allocation6 + $0x168] sm:$0xff]
        %v649 = vld [vmem:[#allocation6 + $0x170] sm:$0xff]
        %v650 = vld [vmem:[#allocation6 + $0x178] sm:$0xff]
        %v651 = vld [vmem:[#allocation6 + $0x180] sm:$0xff]
        %v652 = vld [vmem:[#allocation6 + $0x188] sm:$0xff]
        %v653 = vld [vmem:[#allocation6 + $0x190] sm:$0xff]
        %v654 = vld [vmem:[#allocation6 + $0x198] sm:$0xff]
        %v655 = vld [vmem:[#allocation6 + $0x1a0] sm:$0xff]
        %v656 = vld [vmem:[#allocation6 + $0x1a8] sm:$0xff]
        %v657 = vld [vmem:[#allocation6 + $0x1b0] sm:$0xff]
        %v658 = vld [vmem:[#allocation6 + $0x1b8] sm:$0xff]
        %v659 = vld [vmem:[#allocation6 + $0x1c0] sm:$0xff]
        %v660 = vld [vmem:[#allocation6 + $0x1c8] sm:$0xff]
        %v661 = vld [vmem:[#allocation6 + $0x1d0] sm:$0xff]
        %v662 = vld [vmem:[#allocation6 + $0x1d8] sm:$0xff]
        %v663 = vld [vmem:[#allocation6 + $0x1e0] sm:$0xff]
        %v664 = vld [vmem:[#allocation6 + $0x1e8] sm:$0xff]
        %v665 = vld [vmem:[#allocation6 + $0x1f0] sm:$0xff]
        %v666 = vld [vmem:[#allocation6 + $0x1f8] sm:$0xff]
        %v667 = vld [vmem:[%s5] sm:$0x3]
        %v669 = vlaneseq
        %v670 = vshrl.u32 %v669, 7
        %v671 = vsub.s32 0, %v670
        %v672 = vrot.slane %v667, %v671
        %v673 = vlaneseq
        %v674 = vshrl.u32 %v673, 7
        %v675 = vsub.s32 1, %v674
        %v676 = vrot.slane %v667, %v675
        %v743 = vunpack.c.l.b16 %v603
        %v744 = vunpack.c.h.b16 %v603
        %v745 = vunpack.c.l.b16 %v604
        %v746 = vunpack.c.h.b16 %v604
        %v747 = vunpack.c.l.b16 %v605
        %v748 = vunpack.c.h.b16 %v605
        %v749 = vunpack.c.l.b16 %v606
        %v750 = vunpack.c.h.b16 %v606
        %v751 = vunpack.c.l.b16 %v607
        %v752 = vunpack.c.h.b16 %v607
        %v753 = vunpack.c.l.b16 %v608
        %v754 = vunpack.c.h.b16 %v608
        %v755 = vunpack.c.l.b16 %v609
        %v756 = vunpack.c.h.b16 %v609
        %v757 = vunpack.c.l.b16 %v610
        %v758 = vunpack.c.h.b16 %v610
        %v759 = vunpack.c.l.b16 %v611
        %v760 = vunpack.c.h.b16 %v611
        %v761 = vunpack.c.l.b16 %v612
        %v762 = vunpack.c.h.b16 %v612
        %v763 = vunpack.c.l.b16 %v613
        %v764 = vunpack.c.h.b16 %v613
        %v765 = vunpack.c.l.b16 %v614
        %v766 = vunpack.c.h.b16 %v614
        %v767 = vunpack.c.l.b16 %v615
        %v768 = vunpack.c.h.b16 %v615
        %v769 = vunpack.c.l.b16 %v616
        %v770 = vunpack.c.h.b16 %v616
        %v771 = vunpack.c.l.b16 %v617
        %v772 = vunpack.c.h.b16 %v617
        %v773 = vunpack.c.l.b16 %v618
        %v774 = vunpack.c.h.b16 %v618
        %v775 = vunpack.c.l.b16 %v619
        %v776 = vunpack.c.h.b16 %v619
        %v777 = vunpack.c.l.b16 %v620
        %v778 = vunpack.c.h.b16 %v620
        %v779 = vunpack.c.l.b16 %v621
        %v780 = vunpack.c.h.b16 %v621
        %v781 = vunpack.c.l.b16 %v622
        %v782 = vunpack.c.h.b16 %v622
        %v783 = vunpack.c.l.b16 %v623
        %v784 = vunpack.c.h.b16 %v623
        %v785 = vunpack.c.l.b16 %v624
        %v786 = vunpack.c.h.b16 %v624
        %v787 = vunpack.c.l.b16 %v625
        %v788 = vunpack.c.h.b16 %v625
        %v789 = vunpack.c.l.b16 %v626
        %v790 = vunpack.c.h.b16 %v626
        %v791 = vunpack.c.l.b16 %v627
        %v792 = vunpack.c.h.b16 %v627
        %v793 = vunpack.c.l.b16 %v628
        %v794 = vunpack.c.h.b16 %v628
        %v795 = vunpack.c.l.b16 %v629
        %v796 = vunpack.c.h.b16 %v629
        %v797 = vunpack.c.l.b16 %v630
        %v798 = vunpack.c.h.b16 %v630
        %v799 = vunpack.c.l.b16 %v631
        %v800 = vunpack.c.h.b16 %v631
        %v801 = vunpack.c.l.b16 %v632
        %v802 = vunpack.c.h.b16 %v632
        %v803 = vunpack.c.l.b16 %v633
        %v804 = vunpack.c.h.b16 %v633
        %v805 = vunpack.c.l.b16 %v634
        %v806 = vunpack.c.h.b16 %v634
        %v807 = vunpack.c.l.b16 %v635
        %v808 = vunpack.c.h.b16 %v635
        %v809 = vunpack.c.l.b16 %v636
        %v810 = vunpack.c.h.b16 %v636
        %v811 = vunpack.c.l.b16 %v637
        %v812 = vunpack.c.h.b16 %v637
        %v813 = vunpack.c.l.b16 %v638
        %v814 = vunpack.c.h.b16 %v638
        %v815 = vunpack.c.l.b16 %v639
        %v816 = vunpack.c.h.b16 %v639
        %v817 = vunpack.c.l.b16 %v640
        %v818 = vunpack.c.h.b16 %v640
        %v819 = vunpack.c.l.b16 %v641
        %v820 = vunpack.c.h.b16 %v641
        %v821 = vunpack.c.l.b16 %v642
        %v822 = vunpack.c.h.b16 %v642
        %v823 = vunpack.c.l.b16 %v643
        %v824 = vunpack.c.h.b16 %v643
        %v825 = vunpack.c.l.b16 %v644
        %v826 = vunpack.c.h.b16 %v644
        %v827 = vunpack.c.l.b16 %v645
        %v828 = vunpack.c.h.b16 %v645
        %v829 = vunpack.c.l.b16 %v646
        %v830 = vunpack.c.h.b16 %v646
        %v831 = vunpack.c.l.b16 %v647
        %v832 = vunpack.c.h.b16 %v647
        %v833 = vunpack.c.l.b16 %v648
        %v834 = vunpack.c.h.b16 %v648
        %v835 = vunpack.c.l.b16 %v649
        %v836 = vunpack.c.h.b16 %v649
        %v837 = vunpack.c.l.b16 %v650
        %v838 = vunpack.c.h.b16 %v650
        %v839 = vunpack.c.l.b16 %v651
        %v840 = vunpack.c.h.b16 %v651
        %v841 = vunpack.c.l.b16 %v652
        %v842 = vunpack.c.h.b16 %v652
        %v843 = vunpack.c.l.b16 %v653
        %v844 = vunpack.c.h.b16 %v653
        %v845 = vunpack.c.l.b16 %v654
        %v846 = vunpack.c.h.b16 %v654
        %v847 = vunpack.c.l.b16 %v655
        %v848 = vunpack.c.h.b16 %v655
        %v849 = vunpack.c.l.b16 %v656
        %v850 = vunpack.c.h.b16 %v656
        %v851 = vunpack.c.l.b16 %v657
        %v852 = vunpack.c.h.b16 %v657
        %v853 = vunpack.c.l.b16 %v658
        %v854 = vunpack.c.h.b16 %v658
        %v855 = vunpack.c.l.b16 %v659
        %v856 = vunpack.c.h.b16 %v659
        %v857 = vunpack.c.l.b16 %v660
        %v858 = vunpack.c.h.b16 %v660
        %v859 = vunpack.c.l.b16 %v661
        %v860 = vunpack.c.h.b16 %v661
        %v861 = vunpack.c.l.b16 %v662
        %v862 = vunpack.c.h.b16 %v662
        %v863 = vunpack.c.l.b16 %v663
        %v864 = vunpack.c.h.b16 %v663
        %v865 = vunpack.c.l.b16 %v664
        %v866 = vunpack.c.h.b16 %v664
        %v867 = vunpack.c.l.b16 %v665
        %v868 = vunpack.c.h.b16 %v665
        %v869 = vunpack.c.l.b16 %v666
        %v870 = vunpack.c.h.b16 %v666
        %v871 = vpack.c.b16 %v745, %v743
        %v872 = vpack.c.b16 %v746, %v744
        %v873 = vpack.c.b16 %v749, %v747
        %v874 = vpack.c.b16 %v750, %v748
        %v875 = vpack.c.b16 %v753, %v751
        %v876 = vpack.c.b16 %v754, %v752
        %v877 = vpack.c.b16 %v757, %v755
        %v878 = vpack.c.b16 %v758, %v756
        %v879 = vpack.c.b16 %v761, %v759
        %v880 = vpack.c.b16 %v762, %v760
        %v881 = vpack.c.b16 %v765, %v763
        %v882 = vpack.c.b16 %v766, %v764
        %v883 = vpack.c.b16 %v769, %v767
        %v884 = vpack.c.b16 %v770, %v768
        %v885 = vpack.c.b16 %v773, %v771
        %v886 = vpack.c.b16 %v774, %v772
        %v887 = vpack.c.b16 %v777, %v775
        %v888 = vpack.c.b16 %v778, %v776
        %v889 = vpack.c.b16 %v781, %v779
        %v890 = vpack.c.b16 %v782, %v780
        %v891 = vpack.c.b16 %v785, %v783
        %v892 = vpack.c.b16 %v786, %v784
        %v893 = vpack.c.b16 %v789, %v787
        %v894 = vpack.c.b16 %v790, %v788
        %v895 = vpack.c.b16 %v793, %v791
        %v896 = vpack.c.b16 %v794, %v792
        %v897 = vpack.c.b16 %v797, %v795
        %v898 = vpack.c.b16 %v798, %v796
        %v899 = vpack.c.b16 %v801, %v799
        %v900 = vpack.c.b16 %v802, %v800
        %v901 = vpack.c.b16 %v805, %v803
        %v902 = vpack.c.b16 %v806, %v804
        %v903 = vpack.c.b16 %v809, %v807
        %v904 = vpack.c.b16 %v810, %v808
        %v905 = vpack.c.b16 %v813, %v811
        %v906 = vpack.c.b16 %v814, %v812
        %v907 = vpack.c.b16 %v817, %v815
        %v908 = vpack.c.b16 %v818, %v816
        %v909 = vpack.c.b16 %v821, %v819
        %v910 = vpack.c.b16 %v822, %v820
        %v911 = vpack.c.b16 %v825, %v823
        %v912 = vpack.c.b16 %v826, %v824
        %v913 = vpack.c.b16 %v829, %v827
        %v914 = vpack.c.b16 %v830, %v828
        %v915 = vpack.c.b16 %v833, %v831
        %v916 = vpack.c.b16 %v834, %v832
        %v917 = vpack.c.b16 %v837, %v835
        %v918 = vpack.c.b16 %v838, %v836
        %v919 = vpack.c.b16 %v841, %v839
        %v920 = vpack.c.b16 %v842, %v840
        %v921 = vpack.c.b16 %v845, %v843
        %v922 = vpack.c.b16 %v846, %v844
        %v923 = vpack.c.b16 %v849, %v847
        %v924 = vpack.c.b16 %v850, %v848
        %v925 = vpack.c.b16 %v853, %v851
        %v926 = vpack.c.b16 %v854, %v852
        %v927 = vpack.c.b16 %v857, %v855
        %v928 = vpack.c.b16 %v858, %v856
        %v929 = vpack.c.b16 %v861, %v859
        %v930 = vpack.c.b16 %v862, %v860
        %v931 = vpack.c.b16 %v865, %v863
        %v932 = vpack.c.b16 %v866, %v864
        %v933 = vpack.c.b16 %v869, %v867
        %v934 = vpack.c.b16 %v870, %v868
        %999 = vmatprep.subr.bf16.mxu0 %v886
        %1000 = vmatpush1.bf16.msra.mxu0 %v885
        %1001 = vmatprep.subr.bf16.mxu0 %v884
        %1002 = vmatpush1.bf16.msra.mxu0 %v883
        %1003 = vmatprep.subr.bf16.mxu0 %v882
        %1004 = vmatpush1.bf16.msra.mxu0 %v881
        %1005 = vmatprep.subr.bf16.mxu0 %v880
        %1006 = vmatpush1.bf16.msra.mxu0 %v879
        %1007 = vmatprep.subr.bf16.mxu0 %v878
        %1008 = vmatpush1.bf16.msra.mxu0 %v877
        %1009 = vmatprep.subr.bf16.mxu0 %v876
        %1010 = vmatpush1.bf16.msra.mxu0 %v875
        %1011 = vmatprep.subr.bf16.mxu0 %v874
        %1012 = vmatpush1.bf16.msra.mxu0 %v873
        %1013 = vmatprep.subr.bf16.mxu0 %v872
        %1014 = vmatpush1.bf16.msra.mxu0 %v871
        %1015 = vmatprep.subr.bf16.mxu0 %v902
        %1016 = vmatpush2.bf16.msra.mxu0 %v901
        %1017 = vmatprep.subr.bf16.mxu0 %v900
        %1018 = vmatpush2.bf16.msra.mxu0 %v899
        %1019 = vmatprep.subr.bf16.mxu0 %v898
        %1020 = vmatpush2.bf16.msra.mxu0 %v897
        %1021 = vmatprep.subr.bf16.mxu0 %v896
        %1022 = vmatpush2.bf16.msra.mxu0 %v895
        %1023 = vmatprep.subr.bf16.mxu0 %v894
        %1024 = vmatpush2.bf16.msra.mxu0 %v893
        %1025 = vmatprep.subr.bf16.mxu0 %v892
        %1026 = vmatpush2.bf16.msra.mxu0 %v891
        %1027 = vmatprep.subr.bf16.mxu0 %v890
        %1028 = vmatpush2.bf16.msra.mxu0 %v889
        %1029 = vmatprep.subr.bf16.mxu0 %v888
        %1030 = vmatpush2.bf16.msra.mxu0 %v887
        %1031 = vmatprep.mubr.bf16.mxu0 %v600
        %1032 = vmatmul.mubr.bf16.gmra.mxu0 %v599
        %v1033 = vpop.f32.mrf.mxu0
        %v1034 = vadd.f32 %v672, %v1033
        %v1035 = vpop.f32.mrf.mxu0
        %v1036 = vadd.f32 %v676, %v1035
        %v1037 = vpop.f32.mrf.mxu0
        %v1038 = vadd.f32 %v672, %v1037
        %v1039 = vpop.f32.mrf.mxu0
        %v1040 = vadd.f32 %v676, %v1039
        %1041 = vdwg.mxu0
        %1042 = vmatprep.subr.bf16.mxu0 %v918
        %1043 = vmatpush1.bf16.msra.mxu0 %v917
        %1044 = vmatprep.subr.bf16.mxu0 %v916
        %1045 = vmatpush1.bf16.msra.mxu0 %v915
        %1046 = vmatprep.subr.bf16.mxu0 %v914
        %1047 = vmatpush1.bf16.msra.mxu0 %v913
        %1048 = vmatprep.subr.bf16.mxu0 %v912
        %1049 = vmatpush1.bf16.msra.mxu0 %v911
        %1050 = vmatprep.subr.bf16.mxu0 %v910
        %1051 = vmatpush1.bf16.msra.mxu0 %v909
        %1052 = vmatprep.subr.bf16.mxu0 %v908
        %1053 = vmatpush1.bf16.msra.mxu0 %v907
        %1054 = vmatprep.subr.bf16.mxu0 %v906
        %1055 = vmatpush1.bf16.msra.mxu0 %v905
        %1056 = vmatprep.subr.bf16.mxu0 %v904
        %1057 = vmatpush1.bf16.msra.mxu0 %v903
        %1058 = vmatprep.subr.bf16.mxu0 %v934
        %1059 = vmatpush2.bf16.msra.mxu0 %v933
        %1060 = vmatprep.subr.bf16.mxu0 %v932
        %1061 = vmatpush2.bf16.msra.mxu0 %v931
        %1062 = vmatprep.subr.bf16.mxu0 %v930
        %1063 = vmatpush2.bf16.msra.mxu0 %v929
        %1064 = vmatprep.subr.bf16.mxu0 %v928
        %1065 = vmatpush2.bf16.msra.mxu0 %v927
        %1066 = vmatprep.subr.bf16.mxu0 %v926
        %1067 = vmatpush2.bf16.msra.mxu0 %v925
        %1068 = vmatprep.subr.bf16.mxu0 %v924
        %1069 = vmatpush2.bf16.msra.mxu0 %v923
        %1070 = vmatprep.subr.bf16.mxu0 %v922
        %1071 = vmatpush2.bf16.msra.mxu0 %v921
        %1072 = vmatprep.subr.bf16.mxu0 %v920
        %1073 = vmatpush2.bf16.msra.mxu0 %v919
        %1074 = vmatprep.mubr.bf16.mxu0 %v602
        %1075 = vmatmul.mubr.bf16.gmra.mxu0 %v601
        %v1076 = vpop.f32.mrf.mxu0
        %v1077 = vadd.f32 %v1034, %v1076
        %v1078 = vpop.f32.mrf.mxu0
        %v1079 = vadd.f32 %v1036, %v1078
        %v1080 = vpop.f32.mrf.mxu0
        %v1081 = vadd.f32 %v1038, %v1080
        %v1082 = vpop.f32.mrf.mxu0
        %v1083 = vadd.f32 %v1040, %v1082
        %1084 = vdwg.mxu0
        %vm1085 = vcmp.gt.f32.partialorder %v1077, 0.0
        %vm1086 = vcmp.gt.f32.partialorder %v1079, 0.0
        %vm1087 = vcmp.gt.f32.partialorder %v1081, 0.0
        %vm1088 = vcmp.gt.f32.partialorder %v1083, 0.0
        %v1089 = vstv %s409
        %v1090 = vmul.f32 %v1089, %v1077
        %v1091 = vmul.f32 %v1089, %v1079
        %v1092 = vmul.f32 %v1089, %v1081
        %v1093 = vmul.f32 %v1089, %v1083
        %v1094 = vsel %vm1085, %v1077, %v1090
        %v1095 = vsel %vm1086, %v1079, %v1091
        %v1096 = vsel %vm1087, %v1081, %v1092
        %v1097 = vsel %vm1088, %v1083, %v1093
        %v1098 = vpack.c.bf16 %v1096, %v1094
        %v1099 = vpack.c.bf16 %v1097, %v1095
        %v1100 = vld [vmem:[%s6] sm:$0xf]
        %v1101 = vld [vmem:[%s6 + $0x4] sm:$0xf]
        %v1102 = vld [vmem:[%s6 + $0x8] sm:$0xf]
        %v1103 = vld [vmem:[%s6 + $0xc] sm:$0xf]
        %v1104 = vld [vmem:[%s6 + $0x10] sm:$0xf]
        %v1105 = vld [vmem:[%s6 + $0x14] sm:$0xf]
        %v1106 = vld [vmem:[%s6 + $0x18] sm:$0xf]
        %v1107 = vld [vmem:[%s6 + $0x1c] sm:$0xf]
        %v1108 = vld [vmem:[%s6 + $0x20] sm:$0xf]
        %v1109 = vld [vmem:[%s6 + $0x24] sm:$0xf]
        %v1110 = vld [vmem:[%s6 + $0x28] sm:$0xf]
        %v1111 = vld [vmem:[%s6 + $0x2c] sm:$0xf]
        %v1112 = vld [vmem:[%s6 + $0x30] sm:$0xf]
        %v1113 = vld [vmem:[%s6 + $0x34] sm:$0xf]
        %v1114 = vld [vmem:[%s6 + $0x38] sm:$0xf]
        %v1115 = vld [vmem:[%s6 + $0x3c] sm:$0xf]
        %v1116 = vld [vmem:[%s6 + $0x40] sm:$0xf]
        %v1117 = vld [vmem:[%s6 + $0x44] sm:$0xf]
        %v1118 = vld [vmem:[%s6 + $0x48] sm:$0xf]
        %v1119 = vld [vmem:[%s6 + $0x4c] sm:$0xf]
        %v1120 = vld [vmem:[%s6 + $0x50] sm:$0xf]
        %v1121 = vld [vmem:[%s6 + $0x54] sm:$0xf]
        %v1122 = vld [vmem:[%s6 + $0x58] sm:$0xf]
        %v1123 = vld [vmem:[%s6 + $0x5c] sm:$0xf]
        %v1124 = vld [vmem:[%s6 + $0x60] sm:$0xf]
        %v1125 = vld [vmem:[%s6 + $0x64] sm:$0xf]
        %v1126 = vld [vmem:[%s6 + $0x68] sm:$0xf]
        %v1127 = vld [vmem:[%s6 + $0x6c] sm:$0xf]
        %v1128 = vld [vmem:[%s6 + $0x70] sm:$0xf]
        %v1129 = vld [vmem:[%s6 + $0x74] sm:$0xf]
        %v1130 = vld [vmem:[%s6 + $0x78] sm:$0xf]
        %v1131 = vld [vmem:[%s6 + $0x7c] sm:$0xf]
        %v1132 = vld [vmem:[%s7] sm:$0x1]
        %v1134 = vlaneseq
        %v1135 = vshrl.u32 %v1134, 7
        %v1136 = vsub.s32 0, %v1135
        %v1137 = vrot.slane %v1132, %v1136
        %v1171 = vunpack.c.l.b16 %v1100
        %v1172 = vunpack.c.l.b16 %v1101
        %v1173 = vunpack.c.l.b16 %v1102
        %v1174 = vunpack.c.l.b16 %v1103
        %v1175 = vunpack.c.l.b16 %v1104
        %v1176 = vunpack.c.l.b16 %v1105
        %v1177 = vunpack.c.l.b16 %v1106
        %v1178 = vunpack.c.l.b16 %v1107
        %v1179 = vunpack.c.l.b16 %v1108
        %v1180 = vunpack.c.l.b16 %v1109
        %v1181 = vunpack.c.l.b16 %v1110
        %v1182 = vunpack.c.l.b16 %v1111
        %v1183 = vunpack.c.l.b16 %v1112
        %v1184 = vunpack.c.l.b16 %v1113
        %v1185 = vunpack.c.l.b16 %v1114
        %v1186 = vunpack.c.l.b16 %v1115
        %v1187 = vunpack.c.l.b16 %v1116
        %v1188 = vunpack.c.l.b16 %v1117
        %v1189 = vunpack.c.l.b16 %v1118
        %v1190 = vunpack.c.l.b16 %v1119
        %v1191 = vunpack.c.l.b16 %v1120
        %v1192 = vunpack.c.l.b16 %v1121
        %v1193 = vunpack.c.l.b16 %v1122
        %v1194 = vunpack.c.l.b16 %v1123
        %v1195 = vunpack.c.l.b16 %v1124
        %v1196 = vunpack.c.l.b16 %v1125
        %v1197 = vunpack.c.l.b16 %v1126
        %v1198 = vunpack.c.l.b16 %v1127
        %v1199 = vunpack.c.l.b16 %v1128
        %v1200 = vunpack.c.l.b16 %v1129
        %v1201 = vunpack.c.l.b16 %v1130
        %v1202 = vunpack.c.l.b16 %v1131
        %v1203 = vpack.c.b16 %v1172, %v1171
        %v1204 = vpack.c.b16 %v1174, %v1173
        %v1205 = vpack.c.b16 %v1176, %v1175
        %v1206 = vpack.c.b16 %v1178, %v1177
        %v1207 = vpack.c.b16 %v1180, %v1179
        %v1208 = vpack.c.b16 %v1182, %v1181
        %v1209 = vpack.c.b16 %v1184, %v1183
        %v1210 = vpack.c.b16 %v1186, %v1185
        %v1211 = vpack.c.b16 %v1188, %v1187
        %v1212 = vpack.c.b16 %v1190, %v1189
        %v1213 = vpack.c.b16 %v1192, %v1191
        %v1214 = vpack.c.b16 %v1194, %v1193
        %v1215 = vpack.c.b16 %v1196, %v1195
        %v1216 = vpack.c.b16 %v1198, %v1197
        %v1217 = vpack.c.b16 %v1200, %v1199
        %v1218 = vpack.c.b16 %v1202, %v1201
        %1235 = vmatprep.subr.bf16.mxu0 0
        %1236 = vmatpush1.bf16.msra.mxu0 %v1210
        %1237 = vmatprep.subr.bf16.mxu0 0
        %1238 = vmatpush1.bf16.msra.mxu0 %v1209
        %1239 = vmatprep.subr.bf16.mxu0 0
        %1240 = vmatpush1.bf16.msra.mxu0 %v1208
        %1241 = vmatprep.subr.bf16.mxu0 0
        %1242 = vmatpush1.bf16.msra.mxu0 %v1207
        %1243 = vmatprep.subr.bf16.mxu0 0
        %1244 = vmatpush1.bf16.msra.mxu0 %v1206
        %1245 = vmatprep.subr.bf16.mxu0 0
        %1246 = vmatpush1.bf16.msra.mxu0 %v1205
        %1247 = vmatprep.subr.bf16.mxu0 0
        %1248 = vmatpush1.bf16.msra.mxu0 %v1204
        %1249 = vmatprep.subr.bf16.mxu0 0
        %1250 = vmatpush1.bf16.msra.mxu0 %v1203
        %1251 = vmatprep.subr.bf16.mxu0 0
        %1252 = vmatpush2.bf16.msra.mxu0 %v1218
        %1253 = vmatprep.subr.bf16.mxu0 0
        %1254 = vmatpush2.bf16.msra.mxu0 %v1217
        %1255 = vmatprep.subr.bf16.mxu0 0
        %1256 = vmatpush2.bf16.msra.mxu0 %v1216
        %1257 = vmatprep.subr.bf16.mxu0 0
        %1258 = vmatpush2.bf16.msra.mxu0 %v1215
        %1259 = vmatprep.subr.bf16.mxu0 0
        %1260 = vmatpush2.bf16.msra.mxu0 %v1214
        %1261 = vmatprep.subr.bf16.mxu0 0
        %1262 = vmatpush2.bf16.msra.mxu0 %v1213
        %1263 = vmatprep.subr.bf16.mxu0 0
        %1264 = vmatpush2.bf16.msra.mxu0 %v1212
        %1265 = vmatprep.subr.bf16.mxu0 0
        %1266 = vmatpush2.bf16.msra.mxu0 %v1211
        %1267 = vmatprep.mubr.bf16.mxu0 %v1099
        %1268 = vmatmul.mubr.bf16.gmra.mxu0 %v1098
        %v1269 = vpop.f32.mrf.mxu0
        %v1270 = vadd.f32 %v1137, %v1269
        %v1271 = vpop.f32.mrf.mxu0
        %v1272 = vpop.f32.mrf.mxu0
        %v1273 = vadd.f32 %v1137, %v1272
        %v1274 = vpop.f32.mrf.mxu0
        %1275 = vdwg.mxu0
        %vm1276 = vcmp.gt.f32.partialorder %v1270, 0.0
        %vm1277 = vcmp.gt.f32.partialorder %v1273, 0.0
        %v1278 = vstv %s410
        %v1279 = vmul.f32 %v1278, %v1270
        %v1280 = vmul.f32 %v1278, %v1273
        %v1281 = vsel %vm1276, %v1270, %v1279
        %v1282 = vsel %vm1277, %v1273, %v1280
        %v1283 = vpack.c.bf16 %v1282, %v1281
        %v1284 = vld [vmem:[%s8] sm:$0xf]
        %v1285 = vld [vmem:[%s8 + $0x4] sm:$0xf]
        %v1286 = vld [vmem:[%s8 + $0x8] sm:$0xf]
        %v1287 = vld [vmem:[%s8 + $0xc] sm:$0xf]
        %v1288 = vld [vmem:[%s8 + $0x10] sm:$0xf]
        %v1289 = vld [vmem:[%s8 + $0x14] sm:$0xf]
        %v1290 = vld [vmem:[%s8 + $0x18] sm:$0xf]
        %v1291 = vld [vmem:[%s8 + $0x1c] sm:$0xf]
        %v1292 = vld [vmem:[%s8 + $0x20] sm:$0xf]
        %v1293 = vld [vmem:[%s8 + $0x24] sm:$0xf]
        %v1294 = vld [vmem:[%s8 + $0x28] sm:$0xf]
        %v1295 = vld [vmem:[%s8 + $0x2c] sm:$0xf]
        %v1296 = vld [vmem:[%s8 + $0x30] sm:$0xf]
        %v1297 = vld [vmem:[%s8 + $0x34] sm:$0xf]
        %v1298 = vld [vmem:[%s8 + $0x38] sm:$0xf]
        %v1299 = vld [vmem:[%s8 + $0x3c] sm:$0xf]
        %v1300 = vld [vmem:[%s9] sm:$0x1]
        %v1302 = vlaneseq
        %v1303 = vshrl.u32 %v1302, 7
        %v1304 = vsub.s32 0, %v1303
        %v1305 = vrot.slane %v1300, %v1304
        %v1323 = vunpack.c.l.b16 %v1284
        %v1324 = vunpack.c.l.b16 %v1285
        %v1325 = vunpack.c.l.b16 %v1286
        %v1326 = vunpack.c.l.b16 %v1287
        %v1327 = vunpack.c.l.b16 %v1288
        %v1328 = vunpack.c.l.b16 %v1289
        %v1329 = vunpack.c.l.b16 %v1290
        %v1330 = vunpack.c.l.b16 %v1291
        %v1331 = vunpack.c.l.b16 %v1292
        %v1332 = vunpack.c.l.b16 %v1293
        %v1333 = vunpack.c.l.b16 %v1294
        %v1334 = vunpack.c.l.b16 %v1295
        %v1335 = vunpack.c.l.b16 %v1296
        %v1336 = vunpack.c.l.b16 %v1297
        %v1337 = vunpack.c.l.b16 %v1298
        %v1338 = vunpack.c.l.b16 %v1299
        %v1339 = vpack.c.b16 %v1324, %v1323
        %v1340 = vpack.c.b16 %v1326, %v1325
        %v1341 = vpack.c.b16 %v1328, %v1327
        %v1342 = vpack.c.b16 %v1330, %v1329
        %v1343 = vpack.c.b16 %v1332, %v1331
        %v1344 = vpack.c.b16 %v1334, %v1333
        %v1345 = vpack.c.b16 %v1336, %v1335
        %v1346 = vpack.c.b16 %v1338, %v1337
        %1355 = vmatprep.subr.bf16.mxu0 0
        %1356 = vmatpush1.bf16.msra.mxu0 %v1346
        %1357 = vmatprep.subr.bf16.mxu0 0
        %1358 = vmatpush1.bf16.msra.mxu0 %v1345
        %1359 = vmatprep.subr.bf16.mxu0 0
        %1360 = vmatpush1.bf16.msra.mxu0 %v1344
        %1361 = vmatprep.subr.bf16.mxu0 0
        %1362 = vmatpush1.bf16.msra.mxu0 %v1343
        %1363 = vmatprep.subr.bf16.mxu0 0
        %1364 = vmatpush1.bf16.msra.mxu0 %v1342
        %1365 = vmatprep.subr.bf16.mxu0 0
        %1366 = vmatpush1.bf16.msra.mxu0 %v1341
        %1367 = vmatprep.subr.bf16.mxu0 0
        %1368 = vmatpush1.bf16.msra.mxu0 %v1340
        %1369 = vmatprep.subr.bf16.mxu0 0
        %1370 = vmatpush1.bf16.msra.mxu0 %v1339
        %1371 = vmatprep.subr.bf16.mxu0 0
        %1372 = vmatpush2.bf16.msra.mxu0 0
        %1373 = vmatprep.subr.bf16.mxu0 0
        %1374 = vmatpush2.bf16.msra.mxu0 0
        %1375 = vmatprep.subr.bf16.mxu0 0
        %1376 = vmatpush2.bf16.msra.mxu0 0
        %1377 = vmatprep.subr.bf16.mxu0 0
        %1378 = vmatpush2.bf16.msra.mxu0 0
        %1379 = vmatprep.subr.bf16.mxu0 0
        %1380 = vmatpush2.bf16.msra.mxu0 0
        %1381 = vmatprep.subr.bf16.mxu0 0
        %1382 = vmatpush2.bf16.msra.mxu0 0
        %1383 = vmatprep.subr.bf16.mxu0 0
        %1384 = vmatpush2.bf16.msra.mxu0 0
        %1385 = vmatprep.subr.bf16.mxu0 0
        %1386 = vmatpush2.bf16.msra.mxu0 0
        %1387 = vmatprep.mubr.bf16.mxu0 0
        %1388 = vmatmul.mubr.bf16.gmra.mxu0 %v1283
        %v1389 = vpop.f32.mrf.mxu0
        %v1390 = vadd.f32 %v1305, %v1389
        %v1391 = vpop.f32.mrf.mxu0
        %v1392 = vpop.f32.mrf.mxu0
        %v1393 = vadd.f32 %v1305, %v1392
        %v1394 = vpop.f32.mrf.mxu0
        %1395 = vdwg.mxu0
        %vm1396 = vcmask 130048
        %1397 = vst.msk [vmem:[%s405] sm:$0xff] %vm1396, %v1390
        %1398 = vst.msk [vmem:[%s405 + $0x8] sm:$0xff] %vm1396, %v1393
        %s1399 = smul.u32 2, %s24
        %p1400 = scmp.lt.s32.totalorder %s1399, 5
        %s1401 = scalar_select %p1400, %s1399, 5
        %s1402 = smul.addr %s1401, 8
        %s1403 = scalar_lea.vmem %s10, %s1402
        // Predicated region
        $region73: #{tpu_custom_call.1} parent=59 // pred_check
          %p1404 = pneg %p257
        $region74: #{tpu_custom_call.1} parent=59 // pred_check_branch
          %1406 = sbr.rel (%p1404) target = $region76
        $region75: #{tpu_custom_call.1} parent=59 // pred_region
          %s1407 = smul.u32 2, %s24
        $region76: #{tpu_custom_call.1} parent=59 // pred_fallthru
          _
      $region60: #{tpu_custom_call.1} parent=5 // pred_fallthru
        _
      %p1408 = scmp.le.s32.totalorder 2, %s19
      // Predicated region
      $region77: #{tpu_custom_call.1} parent=5 // pred_check
        %p1409 = pneg %p1408
      $region78: #{tpu_custom_call.1} parent=5 // pred_check_branch
        %1411 = sbr.rel (%p1409) target = $region80
      $region79: #{tpu_custom_call.1} parent=5 // pred_region
        %s1412 = ssub.s32 %s19, 2
        // Predicated region
        $region81: #{tpu_custom_call.1} parent=79 // pred_check
          %p1413 = pneg %p263
        $region82: #{tpu_custom_call.1} parent=79 // pred_check_branch
          %1415 = sbr.rel (%p1413) target = $region84
        $region83: #{tpu_custom_call.1} parent=79 // pred_region
          %s1416 = smul.u32 2, %s25
          %p1417 = scmp.lt.s32.totalorder %s1416, 5
          %s1418 = scalar_select %p1417, %s1416, 5
          %s1419 = smul.addr %s1418, 8
          %s1420 = scalar_lea.vmem %s10, %s1419
        $region84: #{tpu_custom_call.1} parent=79 // pred_fallthru
          _
      $region80: #{tpu_custom_call.1} parent=5 // pred_fallthru
        _
    $region6: #{tpu_custom_call.1} parent=1 // loop_footer
      %s23 = sadd.s32 1, %s19
    $region7: #{tpu_custom_call.1} parent=1 // loop_footer_branch
      %18 = sbr.rel target = $region3
    $region8: #{tpu_custom_call.1} parent=1 // loop_exit
      _
    %1421 = vsyncpa [#allocation3], 1
    %s1422 = scalar_lea.sflag [#allocation3], 1
    %1423 = vsyncpa %s1422, 1
    %1424 = vsyncpa [#allocation7], 1
    %1425 = vsyncpa [#allocation4], 1
    %s1426 = scalar_lea.sflag [#allocation4], 1
    %1427 = vsyncpa %s1426, 1

</llo_original>
